<compile_context>
chip_gen: v6e
topology: v6e:2x2x1
jax: 0.10.0
libtpu: 0.0.40
codegen_flags: <defaults>
</compile_context>

<pallas_src>
import functools

import jax
import jax.numpy as jnp
from jax import lax
from jax.experimental import pallas as pl
from jax.experimental.pallas import tpu as pltpu

IGNORE_LABEL = 255
LANES = 128
SUBLANES = 8
SUB_ROWS = 128            # rows per in-kernel compute sub-tile (64 KiB f32)
MAX_TILE_ROWS = 1024      # rows per DMA block (512 KiB f32 per input)
NUM_PARALLEL_CHUNKS = 2   # leading "parallel" grid axis on 2-TC parts


def _round_up(x, m):
    return ((x + m - 1) // m) * m


def _default_num_chunks():
    """2 on parts with 2 TensorCores per JAX device (v7x / megacore), else 1."""
    try:
        kind = jax.devices()[0].device_kind.lower()
    except Exception:
        return 1
    if any(tag in kind for tag in ("v7", "v4", "v5p")):
        return NUM_PARALLEL_CHUNKS
    return 1


def _bce_partial_kernel(pred_ref, tgt_ref, out_ref, *, ignore_label, tile_rows,
                        sub_rows, steps_per_chunk, total_rows, mask_tail):
    c = pl.program_id(0)   # parallel chunk (one per TensorCore on 2-TC parts)
    i = pl.program_id(1)   # reduction step within the chunk

    # out_ref is the resident per-chunk accumulator (2, 8, 128):
    #   out_ref[0] = masked-loss partial sums, out_ref[1] = valid-pixel counts.
    @pl.when(i == 0)
    def _():
        out_ref[...] = jnp.zeros_like(out_ref)

    num_sub = tile_rows // sub_rows
    unroll = 2 if num_sub > 1 else 1
    ign = jnp.float32(ignore_label)

    def accumulate(use_row_mask):
        row_start = (c * steps_per_chunk + i) * tile_rows
        # Loop-invariant iota, hoisted out of the fori_loop body; only built
        # for the (single) row-masked tail block.
        iota = (lax.broadcasted_iota(jnp.int32, (sub_rows, 1), 0)
                if use_row_mask else None)

        def body(s, carry):
            loss_acc, cnt_acc = carry
            r0 = pl.multiple_of(s * sub_rows, sub_rows)
            x = pred_ref[pl.ds(r0, sub_rows), :].astype(jnp.float32)
            t = tgt_ref[pl.ds(r0, sub_rows), :].astype(jnp.float32)

            valid = jnp.logical_and(t >= 0.0, t != ign)
            if use_row_mask:
                # Partial / OOB rows of the tail block read undefined VMEM,
                # so additionally mask by global row index.
                rid = row_start + r0 + iota
                valid = jnp.logical_and(valid, rid < total_rows)

            # Numerically stable binary_cross_entropy_with_logits.
            loss = jnp.maximum(x, 0.0) - x * t + jnp.log1p(jnp.exp(-jnp.abs(x)))
            # Select, NOT multiply: garbage lanes may hold NaN/Inf and a
            # multiply would propagate NaN*0 into the accumulator.
            loss = jnp.where(valid, loss, 0.0)
            cnt = valid.astype(jnp.float32)

            # Pure-VPU partial reduce onto an (8, 128) vreg-shaped slab
            # (no cross-lane XLU work on the per-step critical path).
            loss_acc = loss_acc + loss.reshape(
                sub_rows // SUBLANES, SUBLANES, LANES).sum(axis=0)
            cnt_acc = cnt_acc + cnt.reshape(
                sub_rows // SUBLANES, SUBLANES, LANES).sum(axis=0)
            return loss_acc, cnt_acc

        zero = jnp.zeros((SUBLANES, LANES), jnp.float32)
        loss_acc, cnt_acc = lax.fori_loop(0, num_sub, body, (zero, zero),
                                          unroll=unroll)
        out_ref[0] += loss_acc
        out_ref[1] += cnt_acc

    if mask_tail:
        # Exactly one globally-last block may be partial; all others run the
        # lean (mask-free) path.
        is_tail = jnp.logical_and(c == pl.num_programs(0) - 1,
                                  i == pl.num_programs(1) - 1)

        @pl.when(jnp.logical_not(is_tail))
        def _():
            accumulate(False)

        @pl.when(is_tail)
        def _():
            accumulate(True)
    else:
        accumulate(False)


def bce_with_logits_loss_2d(predict, target, *, size_average=True,
                            ignore_label=IGNORE_LABEL, num_chunks=None):
    """predict, target: (n, 1, h, w). Scalar mean (or sum) loss; 0.0 if no valid px."""
    assert predict.ndim == 4 and target.ndim == 4
    assert predict.shape == target.shape
    # TODO(synk): optional per-class `weight` rescaling is not implemented (weight=None path only).

    total = 1
    for d in predict.shape:
        total *= d

    p_flat = predict.reshape(-1)
    t_flat = target.reshape(-1)

    # Lane-dense slab (rows, 128). The reshape is free when total % 128 == 0
    # (common for image shapes); otherwise pad minimally to the next lane
    # multiple (padded targets = ignore_label so they are masked out).
    rem = total % LANES
    if rem:
        pad = LANES - rem
        p_flat = jnp.pad(p_flat, (0, pad))
        t_flat = jnp.pad(t_flat, (0, pad), constant_values=ignore_label)
        total += pad
    rows = total // LANES
    p2d = p_flat.reshape(rows, LANES)
    t2d = t_flat.reshape(rows, LANES)

    if num_chunks is None:
        num_chunks = _default_num_chunks()
    num_chunks = max(1, int(num_chunks))

    # Tile sizing: ~1024-row DMA blocks (HBM roofline already saturates there),
    # sub-tiled to 128 rows for compute; tile_rows is chosen so the chunk
    # split is exact (no clamped / duplicated blocks).
    r8 = _round_up(rows, SUBLANES)
    sub_rows = min(SUB_ROWS, r8)
    if r8 <= sub_rows:
        num_chunks = 1
        tile_rows = sub_rows
    else:
        tile_rows = min(MAX_TILE_ROWS,
                        _round_up(pl.cdiv(rows, num_chunks), sub_rows))
        while num_chunks > 1 and pl.cdiv(rows, tile_rows) % num_chunks != 0:
            if tile_rows > sub_rows:
                tile_rows -= sub_rows
            else:
                num_chunks = 1

    num_row_blocks = pl.cdiv(rows, tile_rows)
    if num_row_blocks % num_chunks != 0:   # safety net; should not trigger
        num_chunks = 1
    steps_per_chunk = num_row_blocks // num_chunks
    mask_tail = (rows % tile_rows) != 0

    def in_index_map(c, i):
        return (c * steps_per_chunk + i, 0)

    kernel = functools.partial(
        _bce_partial_kernel,
        ignore_label=ignore_label,
        tile_rows=tile_rows,
        sub_rows=sub_rows,
        steps_per_chunk=steps_per_chunk,
        total_rows=rows,
        mask_tail=mask_tail,
    )

    partials = pl.pallas_call(
        kernel,
        out_shape=jax.ShapeDtypeStruct((num_chunks, 2, SUBLANES, LANES),
                                       jnp.float32),
        grid_spec=pltpu.PrefetchScalarGridSpec(
            num_scalar_prefetch=0,
            grid=(num_chunks, steps_per_chunk),
            in_specs=[
                pl.BlockSpec((tile_rows, LANES), in_index_map),
                pl.BlockSpec((tile_rows, LANES), in_index_map),
            ],
            out_specs=pl.BlockSpec((None, 2, SUBLANES, LANES),
                                   lambda c, i: (c, 0, 0, 0)),
        ),
        compiler_params=pltpu.CompilerParams(
            dimension_semantics=("parallel", "arbitrary"),
            vmem_limit_bytes=16 * 1024 * 1024,
        ),
    )(p2d, t2d)

    s = jnp.sum(partials[:, 0])
    k = jnp.sum(partials[:, 1])
    if size_average:
        return jnp.where(k > 0, s / jnp.maximum(k, 1.0), jnp.float32(0.0))
    return jnp.where(k > 0, s, jnp.float32(0.0))


def _reference(predict, target, ignore_label=IGNORE_LABEL):
    x = predict.astype(jnp.float32)
    t = target.astype(jnp.float32)
    mask = jnp.logical_and(t >= 0.0, t != float(ignore_label)).astype(jnp.float32)
    loss = jnp.maximum(x, 0.0) - x * t + jnp.log1p(jnp.exp(-jnp.abs(x)))
    return jnp.sum(loss * mask) / jnp.maximum(jnp.sum(mask), 1.0)


if __name__ == "__main__":
    key = jax.random.PRNGKey(0)
    k1, k2, k3, k4, k5, k6, k7, k8 = jax.random.split(key, 8)

    # Primary small test, (n, 1, h, w) like the module docstring.
    n, c, h, w = 2, 1, 16, 16
    predict = jax.random.normal(k1, (n, c, h, w), dtype=jnp.float32)
    target = jax.random.uniform(k2, (n, c, h, w), dtype=jnp.float32)
    ignore_mask = jax.random.bernoulli(k3, p=0.2, shape=(n, c, h, w))
    target = jnp.where(ignore_mask, jnp.float32(IGNORE_LABEL), target)

    loss = jax.block_until_ready(bce_with_logits_loss_2d(predict, target))
    ref = _reference(predict, target)
    assert jnp.allclose(loss, ref, rtol=1e-4, atol=1e-5), (loss, ref)

    # Ragged shape (total not a multiple of 128): exercises minimal-pad + row-tail mask.
    p2 = jax.random.normal(k4, (1, 1, 7, 9), dtype=jnp.float32)
    t2 = jax.random.uniform(k5, (1, 1, 7, 9), dtype=jnp.float32)
    loss2 = jax.block_until_ready(bce_with_logits_loss_2d(p2, t2))
    ref2 = _reference(p2, t2)
    assert jnp.allclose(loss2, ref2, rtol=1e-4, atol=1e-5), (loss2, ref2)

    # Medium shape: multi-block grid, exact chunk split, partial tail block.
    p3 = jax.random.normal(k6, (2, 1, 640, 512), dtype=jnp.float32)
    t3 = jax.random.uniform(k7, (2, 1, 640, 512), dtype=jnp.float32)
    im3 = jax.random.bernoulli(k8, p=0.2, shape=(2, 1, 640, 512))
    t3 = jnp.where(im3, jnp.float32(IGNORE_LABEL), t3)
    loss3 = jax.block_until_ready(bce_with_logits_loss_2d(p3, t3))
    ref3 = _reference(p3, t3)
    assert jnp.allclose(loss3, ref3, rtol=1e-4, atol=1e-5), (loss3, ref3)

    # Explicit 2-chunk path (forces the leading "parallel" axis even on 1-TC parts).
    loss3b = jax.block_until_ready(bce_with_logits_loss_2d(p3, t3, num_chunks=2))
    assert jnp.allclose(loss3b, ref3, rtol=1e-4, atol=1e-5), (loss3b, ref3)

    print("KERNEL_OK")
</pallas_src>

<mosaic_0001>
module attributes {stable_mosaic.version = 11 : i64} {
  func.func @_bce_partial_kernel(%arg0: i32, %arg1: i32, %arg2: memref<8x128xf32, #tpu.memory_space<vmem>>, %arg3: memref<8x128xf32, #tpu.memory_space<vmem>>, %arg4: memref<1x2x8x128xf32, #tpu.memory_space<vmem>>) attributes {dimension_semantics = [#tpu.dimension_semantics<parallel>, #tpu.dimension_semantics<arbitrary>], iteration_bounds = array<i64: 1, 1>, scalar_prefetch = 0 : i64, scratch_operands = 0 : i64, tpu.core_type = #tpu.core_type<tc>, window_params = [{transform_indices = @transform_0, window_bounds = array<i64: 8, 128>}, {transform_indices = @transform_1, window_bounds = array<i64: 8, 128>}, {transform_indices = @transform_2, window_bounds = array<i64: 1, 2, 8, 128>}]} {
    %c0_i32 = arith.constant 0 : i32
    %0 = arith.cmpi eq, %arg1, %c0_i32 : i32
    %1 = arith.extui %0 : i1 to i32
    %c0_i32_0 = arith.constant 0 : i32
    %2 = arith.cmpi ne, %1, %c0_i32_0 : i32
    scf.if %2 {
      %cst_6 = arith.constant 0.000000e+00 : f32
      %11 = vector.broadcast %cst_6 : f32 to vector<2x8x128xf32>
      %c0 = arith.constant 0 : index
      %c0_7 = arith.constant 0 : index
      %c0_8 = arith.constant 0 : index
      %c0_9 = arith.constant 0 : index
      %12 = vector.load %arg4[%c0, %c0_7, %c0_8, %c0_9] : memref<1x2x8x128xf32, #tpu.memory_space<vmem>>, vector<1x2x8x128xf32>
      %13 = vector.shape_cast %12 : vector<1x2x8x128xf32> to vector<2x8x128xf32>
      %14 = vector.shape_cast %11 : vector<2x8x128xf32> to vector<1x2x8x128xf32>
      tpu.vector_store %arg4[%c0, %c0_7, %c0_8, %c0_9], %14 {strides = array<i32>} : memref<1x2x8x128xf32, #tpu.memory_space<vmem>>, vector<1x2x8x128xf32>,
    } else {
    }
    %c0_i32_1 = arith.constant 0 : i32
    %3 = arith.cmpi eq, %arg0, %c0_i32_1 : i32
    %c0_i32_2 = arith.constant 0 : i32
    %4 = arith.cmpi eq, %arg1, %c0_i32_2 : i32
    %5 = arith.andi %3, %4 : i1
    %true = arith.constant true
    %6 = arith.xori %5, %true : i1
    %7 = arith.extui %6 : i1 to i32
    %cst = arith.constant 2.550000e+02 : f32
    %c0_i32_3 = arith.constant 0 : i32
    %8 = arith.cmpi ne, %7, %c0_i32_3 : i32
    scf.if %8 {
      %cst_6 = arith.constant 0.000000e+00 : f32
      %11 = vector.broadcast %cst_6 : f32 to vector<8x128xf32>
      %c0_i32_7 = arith.constant 0 : i32
      %c8_i32 = arith.constant 8 : i32
      %12 = arith.muli %c0_i32_7, %c8_i32 : i32
      %13 = tpu.assume_multiple %12, 8 : i32
      %14 = arith.index_cast %13 : i32 to index
      %c0 = arith.constant 0 : index
      %15 = vector.load %arg2[%14, %c0] : memref<8x128xf32, #tpu.memory_space<vmem>>, vector<8x128xf32>
      %16 = arith.index_cast %13 : i32 to index
      %c0_8 = arith.constant 0 : index
      %17 = vector.load %arg3[%16, %c0_8] : memref<8x128xf32, #tpu.memory_space<vmem>>, vector<8x128xf32>
      %cst_9 = arith.constant 0.000000e+00 : f32
      %18 = vector.broadcast %cst_9 : f32 to vector<8x128xf32>
      %19 = arith.cmpf oge, %17, %18 : vector<8x128xf32>
      %20 = vector.broadcast %cst : f32 to vector<8x128xf32>
      %21 = arith.cmpf one, %17, %20 : vector<8x128xf32>
      %22 = arith.andi %19, %21 : vector<8x128xi1>
      %cst_10 = arith.constant 0.000000e+00 : f32
      %23 = vector.broadcast %cst_10 : f32 to vector<8x128xf32>
      %24 = arith.maximumf %15, %23 : vector<8x128xf32>
      %25 = arith.mulf %15, %17 : vector<8x128xf32>
      %26 = arith.subf %24, %25 : vector<8x128xf32>
      %27 = math.absf %15 : vector<8x128xf32>
      %cst_11 = arith.constant 0.000000e+00 : f32
      %28 = vector.broadcast %cst_11 : f32 to vector<8x128xf32>
      %29 = arith.subf %28, %27 : vector<8x128xf32>
      %30 = math.exp %29 : vector<8x128xf32>
      %31 = math.log1p %30 : vector<8x128xf32>
      %32 = arith.addf %26, %31 : vector<8x128xf32>
      %cst_12 = arith.constant 0.000000e+00 : f32
      %33 = vector.broadcast %cst_12 : f32 to vector<8x128xf32>
      %34 = arith.select %22, %32, %33 : vector<8x128xi1>, vector<8x128xf32>
      %35 = arith.extui %22 : vector<8x128xi1> to vector<8x128xi32>
      %36 = arith.sitofp %35 : vector<8x128xi32> to vector<8x128xf32>
      %37 = vector.shape_cast %34 : vector<8x128xf32> to vector<1x8x128xf32>
      %cst_13 = arith.constant dense<0.000000e+00> : vector<8x128xf32>
      %38 = vector.multi_reduction <add>, %37, %cst_13 [0] : vector<1x8x128xf32> to vector<8x128xf32>
      %39 = arith.addf %11, %38 : vector<8x128xf32>
      %40 = vector.shape_cast %36 : vector<8x128xf32> to vector<1x8x128xf32>
      %cst_14 = arith.constant dense<0.000000e+00> : vector<8x128xf32>
      %41 = vector.multi_reduction <add>, %40, %cst_14 [0] : vector<1x8x128xf32> to vector<8x128xf32>
      %42 = arith.addf %11, %41 : vector<8x128xf32>
      %c1_i32 = arith.constant 1 : i32
      %c0_15 = arith.constant 0 : index
      %c0_16 = arith.constant 0 : index
      %c0_17 = arith.constant 0 : index
      %c0_18 = arith.constant 0 : index
      %43 = vector.load %arg4[%c0_15, %c0_16, %c0_17, %c0_18] : memref<1x2x8x128xf32, #tpu.memory_space<vmem>>, vector<1x1x8x128xf32>
      %44 = vector.shape_cast %43 : vector<1x1x8x128xf32> to vector<8x128xf32>
      %45 = arith.addf %44, %39 : vector<8x128xf32>
      %c0_19 = arith.constant 0 : index
      %c0_20 = arith.constant 0 : index
      %c0_21 = arith.constant 0 : index
      %c0_22 = arith.constant 0 : index
      %46 = vector.load %arg4[%c0_19, %c0_20, %c0_21, %c0_22] : memref<1x2x8x128xf32, #tpu.memory_space<vmem>>, vector<1x1x8x128xf32>
      %47 = vector.shape_cast %46 : vector<1x1x8x128xf32> to vector<8x128xf32>
      %48 = vector.shape_cast %45 : vector<8x128xf32> to vector<1x1x8x128xf32>
      tpu.vector_store %arg4[%c0_19, %c0_20, %c0_21, %c0_22], %48 {strides = array<i32>} : memref<1x2x8x128xf32, #tpu.memory_space<vmem>>, vector<1x1x8x128xf32>,
      %c0_23 = arith.constant 0 : index
      %c1 = arith.constant 1 : index
      %c0_24 = arith.constant 0 : index
      %c0_25 = arith.constant 0 : index
      %49 = vector.load %arg4[%c0_23, %c1, %c0_24, %c0_25] : memref<1x2x8x128xf32, #tpu.memory_space<vmem>>, vector<1x1x8x128xf32>
      %50 = vector.shape_cast %49 : vector<1x1x8x128xf32> to vector<8x128xf32>
      %51 = arith.addf %50, %42 : vector<8x128xf32>
      %c0_26 = arith.constant 0 : index
      %c1_27 = arith.constant 1 : index
      %c0_28 = arith.constant 0 : index
      %c0_29 = arith.constant 0 : index
      %52 = vector.load %arg4[%c0_26, %c1_27, %c0_28, %c0_29] : memref<1x2x8x128xf32, #tpu.memory_space<vmem>>, vector<1x1x8x128xf32>
      %53 = vector.shape_cast %52 : vector<1x1x8x128xf32> to vector<8x128xf32>
      %54 = vector.shape_cast %51 : vector<8x128xf32> to vector<1x1x8x128xf32>
      tpu.vector_store %arg4[%c0_26, %c1_27, %c0_28, %c0_29], %54 {strides = array<i32>} : memref<1x2x8x128xf32, #tpu.memory_space<vmem>>, vector<1x1x8x128xf32>,
    } else {
    }
    %9 = arith.extui %5 : i1 to i32
    %cst_4 = arith.constant 2.550000e+02 : f32
    %c0_i32_5 = arith.constant 0 : i32
    %10 = arith.cmpi ne, %9, %c0_i32_5 : i32
    scf.if %10 {
      %c1_i32 = arith.constant 1 : i32
      %11 = arith.muli %arg0, %c1_i32 : i32
      %12 = arith.addi %11, %arg1 : i32
      %c8_i32 = arith.constant 8 : i32
      %13 = arith.muli %12, %c8_i32 : i32
      %14 = tpu.iota {dimensions = array<i32: 0>} : vector<8x1xi32>
      %cst_6 = arith.constant 0.000000e+00 : f32
      %15 = vector.broadcast %cst_6 : f32 to vector<8x128xf32>
      %c0_i32_7 = arith.constant 0 : i32
      %c8_i32_8 = arith.constant 8 : i32
      %16 = arith.muli %c0_i32_7, %c8_i32_8 : i32
      %17 = tpu.assume_multiple %16, 8 : i32
      %18 = arith.index_cast %17 : i32 to index
      %c0 = arith.constant 0 : index
      %19 = vector.load %arg2[%18, %c0] : memref<8x128xf32, #tpu.memory_space<vmem>>, vector<8x128xf32>
      %20 = arith.index_cast %17 : i32 to index
      %c0_9 = arith.constant 0 : index
      %21 = vector.load %arg3[%20, %c0_9] : memref<8x128xf32, #tpu.memory_space<vmem>>, vector<8x128xf32>
      %cst_10 = arith.constant 0.000000e+00 : f32
      %22 = vector.broadcast %cst_10 : f32 to vector<8x128xf32>
      %23 = arith.cmpf oge, %21, %22 : vector<8x128xf32>
      %24 = vector.broadcast %cst_4 : f32 to vector<8x128xf32>
      %25 = arith.cmpf one, %21, %24 : vector<8x128xf32>
      %26 = arith.andi %23, %25 : vector<8x128xi1>
      %27 = arith.addi %13, %17 : i32
      %28 = vector.broadcast %27 : i32 to vector<8x1xi32>
      %29 = arith.addi %28, %14 : vector<8x1xi32>
      %c4_i32 = arith.constant 4 : i32
      %30 = vector.broadcast %c4_i32 : i32 to vector<8x1xi32>
      %31 = arith.cmpi slt, %29, %30 : vector<8x1xi32>
      %32 = vector.broadcast %31 : vector<8x1xi1> to vector<8x128xi1>
      %33 = arith.andi %26, %32 : vector<8x128xi1>
      %cst_11 = arith.constant 0.000000e+00 : f32
      %34 = vector.broadcast %cst_11 : f32 to vector<8x128xf32>
      %35 = arith.maximumf %19, %34 : vector<8x128xf32>
      %36 = arith.mulf %19, %21 : vector<8x128xf32>
      %37 = arith.subf %35, %36 : vector<8x128xf32>
      %38 = math.absf %19 : vector<8x128xf32>
      %cst_12 = arith.constant 0.000000e+00 : f32
      %39 = vector.broadcast %cst_12 : f32 to vector<8x128xf32>
      %40 = arith.subf %39, %38 : vector<8x128xf32>
      %41 = math.exp %40 : vector<8x128xf32>
      %42 = math.log1p %41 : vector<8x128xf32>
      %43 = arith.addf %37, %42 : vector<8x128xf32>
      %cst_13 = arith.constant 0.000000e+00 : f32
      %44 = vector.broadcast %cst_13 : f32 to vector<8x128xf32>
      %45 = arith.select %33, %43, %44 : vector<8x128xi1>, vector<8x128xf32>
      %46 = arith.extui %33 : vector<8x128xi1> to vector<8x128xi32>
      %47 = arith.sitofp %46 : vector<8x128xi32> to vector<8x128xf32>
      %48 = vector.shape_cast %45 : vector<8x128xf32> to vector<1x8x128xf32>
      %cst_14 = arith.constant dense<0.000000e+00> : vector<8x128xf32>
      %49 = vector.multi_reduction <add>, %48, %cst_14 [0] : vector<1x8x128xf32> to vector<8x128xf32>
      %50 = arith.addf %15, %49 : vector<8x128xf32>
      %51 = vector.shape_cast %47 : vector<8x128xf32> to vector<1x8x128xf32>
      %cst_15 = arith.constant dense<0.000000e+00> : vector<8x128xf32>
      %52 = vector.multi_reduction <add>, %51, %cst_15 [0] : vector<1x8x128xf32> to vector<8x128xf32>
      %53 = arith.addf %15, %52 : vector<8x128xf32>
      %c1_i32_16 = arith.constant 1 : i32
      %c0_17 = arith.constant 0 : index
      %c0_18 = arith.constant 0 : index
      %c0_19 = arith.constant 0 : index
      %c0_20 = arith.constant 0 : index
      %54 = vector.load %arg4[%c0_17, %c0_18, %c0_19, %c0_20] : memref<1x2x8x128xf32, #tpu.memory_space<vmem>>, vector<1x1x8x128xf32>
      %55 = vector.shape_cast %54 : vector<1x1x8x128xf32> to vector<8x128xf32>
      %56 = arith.addf %55, %50 : vector<8x128xf32>
      %c0_21 = arith.constant 0 : index
      %c0_22 = arith.constant 0 : index
      %c0_23 = arith.constant 0 : index
      %c0_24 = arith.constant 0 : index
      %57 = vector.load %arg4[%c0_21, %c0_22, %c0_23, %c0_24] : memref<1x2x8x128xf32, #tpu.memory_space<vmem>>, vector<1x1x8x128xf32>
      %58 = vector.shape_cast %57 : vector<1x1x8x128xf32> to vector<8x128xf32>
      %59 = vector.shape_cast %56 : vector<8x128xf32> to vector<1x1x8x128xf32>
      tpu.vector_store %arg4[%c0_21, %c0_22, %c0_23, %c0_24], %59 {strides = array<i32>} : memref<1x2x8x128xf32, #tpu.memory_space<vmem>>, vector<1x1x8x128xf32>,
      %c0_25 = arith.constant 0 : index
      %c1 = arith.constant 1 : index
      %c0_26 = arith.constant 0 : index
      %c0_27 = arith.constant 0 : index
      %60 = vector.load %arg4[%c0_25, %c1, %c0_26, %c0_27] : memref<1x2x8x128xf32, #tpu.memory_space<vmem>>, vector<1x1x8x128xf32>
      %61 = vector.shape_cast %60 : vector<1x1x8x128xf32> to vector<8x128xf32>
      %62 = arith.addf %61, %53 : vector<8x128xf32>
      %c0_28 = arith.constant 0 : index
      %c1_29 = arith.constant 1 : index
      %c0_30 = arith.constant 0 : index
      %c0_31 = arith.constant 0 : index
      %63 = vector.load %arg4[%c0_28, %c1_29, %c0_30, %c0_31] : memref<1x2x8x128xf32, #tpu.memory_space<vmem>>, vector<1x1x8x128xf32>
      %64 = vector.shape_cast %63 : vector<1x1x8x128xf32> to vector<8x128xf32>
      %65 = vector.shape_cast %62 : vector<8x128xf32> to vector<1x1x8x128xf32>
      tpu.vector_store %arg4[%c0_28, %c1_29, %c0_30, %c0_31], %65 {strides = array<i32>} : memref<1x2x8x128xf32, #tpu.memory_space<vmem>>, vector<1x1x8x128xf32>,
    } else {
    }
    return
  }
  func.func @transform_0(%arg0: i32, %arg1: i32) -> (i32, i32) {
    %c1_i32 = arith.constant 1 : i32
    %0 = arith.muli %arg0, %c1_i32 : i32
    %1 = arith.addi %0, %arg1 : i32
    %c0_i32 = arith.constant 0 : i32
    %c0_i32_0 = arith.constant 0 : i32
    return %1, %c0_i32 : i32, i32
  }
  func.func @transform_1(%arg0: i32, %arg1: i32) -> (i32, i32) {
    %c1_i32 = arith.constant 1 : i32
    %0 = arith.muli %arg0, %c1_i32 : i32
    %1 = arith.addi %0, %arg1 : i32
    %c0_i32 = arith.constant 0 : i32
    %c0_i32_0 = arith.constant 0 : i32
    return %1, %c0_i32 : i32, i32
  }
  func.func @transform_2(%arg0: i32, %arg1: i32) -> (i32, i32, i32, i32) {
    %c0_i32 = arith.constant 0 : i32
    %c0_i32_0 = arith.constant 0 : i32
    %c0_i32_1 = arith.constant 0 : i32
    %c0_i32_2 = arith.constant 0 : i32
    return %arg0, %c0_i32, %c0_i32_0, %c0_i32_1 : i32, i32, i32, i32
  }
}

</mosaic_0001>

<llo_original>
// kernel: tpu_custom_call.1
$region0: #{tpu_custom_call.1}
  #allocation0 [shape = 'u32[]', space=smem, size = 0x4, offset = 0x4, fixed_abs, tag = 'smem constant byte address 0x4 - core index']
  #allocation1 [shape = 'u32[144,128]{1,0:T(1,128)}', space=vmem, size = 0x12000, scoped, tag = 'internal scratch']
  %s0 = inlined_call_operand.hbm [shape: f32[4,128], index: 0, kind: input, shape index: {}]
  %s1 = inlined_call_operand.hbm [shape: f32[4,128], index: 1, kind: input, shape index: {}]
  %s2 = inlined_call_operand.hbm [shape: f32[1,2,8,128], index: 2, kind: output, shape index: {}]
  %s3 = sld [smem:[#allocation0]]
  $region38: #{tpu_custom_call.1} parent=0
    _
  %s5 = ssub.s32 1, %s3
  %s6 = scalar_select 0, %s5, %s3
  $region1: #{tpu_custom_call.1} parent=0
    #allocation2 [shape = 'u8[4096]{0}', space=vmem, size = 0x1000, scoped, tag = 'input window, operand 0, single buffered']
    #allocation3 [shape = 's32[1]{0}', space=sflag, size = 0x4, scoped, tag = 'scoped memory for tpu_custom_call.1']
    #allocation4 [shape = 's32[1]{0}', space=sflag, size = 0x4, scoped, tag = 'scoped memory for tpu_custom_call.1']
    #allocation5 [shape = 'u8[4096]{0}', space=vmem, size = 0x1000, scoped, tag = 'input window, operand 1, single buffered']
    #allocation6 [shape = 's32[1]{0}', space=sflag, size = 0x4, scoped, tag = 'scoped memory for tpu_custom_call.1']
    #allocation7 [shape = 'u8[8192]{0}', space=vmem, size = 0x2000, scoped, tag = 'output window, operand 0, single buffered']
    %7 = vsyncpa [#allocation3], 0
    %8 = vsyncpa [#allocation6], 0
    %9 = vsyncpa [#allocation4], 0
    // Predicated region
    $region2: #{tpu_custom_call.1} parent=1 // pred_check
      _
    $region3: #{tpu_custom_call.1} parent=1 // pred_check_branch
      %11 = sbr.rel (0) target = $region5
    $region4: #{tpu_custom_call.1} parent=1 // pred_region
      %s12 = sadd.s32 0, 0
      %s13 = smul.u32 2, %s12
      %s14 = ssub.s32 1, %s13
      %s15 = smul.u32 64, %s14
      %s17 = ssub.s32 128, %s15
      %18 = vsyncadd [#allocation3], %s17
      %p19 = scmp.ne.s32.totalorder 0, %s15
      %s20 = smul.addr %s13, 64
      %s21 = scalar_lea.hbm %s0, %s20
      %s22 = smul.u32 4, %s14
      %s23 = sshll.u32 [#allocation2], 4
      %s24 = int_to_ptr.vmem [resolvable:$true] %s23
      %s25 = sshll.u32 %s22, 4
      %29 = dma.hbm_to_vmem [thread:$0]  (%p19), %s21, %s25, %s24, [#allocation3], 64, 64, 4
    $region5: #{tpu_custom_call.1} parent=1 // pred_fallthru
      _
    // Predicated region
    $region6: #{tpu_custom_call.1} parent=1 // pred_check
      _
    $region7: #{tpu_custom_call.1} parent=1 // pred_check_branch
      %31 = sbr.rel (0) target = $region9
    $region8: #{tpu_custom_call.1} parent=1 // pred_region
      %s32 = sadd.s32 0, 0
      %s33 = smul.u32 2, %s32
      %s34 = ssub.s32 1, %s33
      %s35 = smul.u32 64, %s34
      %s37 = ssub.s32 128, %s35
      %38 = vsyncadd [#allocation6], %s37
      %p39 = scmp.ne.s32.totalorder 0, %s35
      %s40 = smul.addr %s33, 64
      %s41 = scalar_lea.hbm %s1, %s40
      %s42 = smul.u32 4, %s34
      %s43 = sshll.u32 [#allocation5], 4
      %s44 = int_to_ptr.vmem [resolvable:$true] %s43
      %s45 = sshll.u32 %s42, 4
      %49 = dma.hbm_to_vmem [thread:$0]  (%p39), %s41, %s45, %s44, [#allocation6], 64, 64, 4
    $region9: #{tpu_custom_call.1} parent=1 // pred_fallthru
      _
    // Predicated region
    $region10: #{tpu_custom_call.1} parent=1 // pred_check
      _
    $region11: #{tpu_custom_call.1} parent=1 // pred_check_branch
      %51 = sbr.rel (0) target = $region13
    $region12: #{tpu_custom_call.1} parent=1 // pred_region
      %52 = dma.done [#allocation3], 128
    $region13: #{tpu_custom_call.1} parent=1 // pred_fallthru
      _
    // Predicated region
    $region14: #{tpu_custom_call.1} parent=1 // pred_check
      _
    $region15: #{tpu_custom_call.1} parent=1 // pred_check_branch
      %54 = sbr.rel (0) target = $region17
    $region16: #{tpu_custom_call.1} parent=1 // pred_region
      %55 = dma.done [#allocation6], 128
    $region17: #{tpu_custom_call.1} parent=1 // pred_fallthru
      _
    %s56 = sadd.s32 0, 0
    %s57 = smul.u32 2, %s56
    %s58 = ssub.s32 1, %s57
    %s59 = smul.u32 64, %s58
    %s60 = sadd.s32 0, 0
    %s61 = smul.u32 2, %s60
    %s62 = ssub.s32 1, %s61
    %s63 = smul.u32 64, %s62
    %p64 = scmp.eq.s32.totalorder 0, 0
    // Predicated region
    $region18: #{tpu_custom_call.1} parent=1 // pred_check
      %p65 = pneg %p64
    $region19: #{tpu_custom_call.1} parent=1 // pred_check_branch
      %67 = sbr.rel (%p65) target = $region21
    $region20: #{tpu_custom_call.1} parent=1 // pred_region
      %68 = vst [vmem:[#allocation7] sm:$0xff] 0.0
      %69 = vst [vmem:[#allocation7 + $0x8] sm:$0xff] 0.0
    $region21: #{tpu_custom_call.1} parent=1 // pred_fallthru
      _
    %p70 = scmp.eq.s32.totalorder 0, 0
    %p71 = pnand %p70, %p64
    %p72 = pneg %p71
    // Predicated region
    $region22: #{tpu_custom_call.1} parent=1 // pred_check
      _
    $region23: #{tpu_custom_call.1} parent=1 // pred_check_branch
      %74 = sbr.rel (%p71) target = $region25
    $region24: #{tpu_custom_call.1} parent=1 // pred_region
      %s75 = sadd.s32 0, 0
      %s76 = smul.u32 %s75, 8
      %v77 = vlaneseq
      %v78 = vshrl.u32 %v77, 7
      %v79 = vld [vmem:[#allocation2] sm:$0xff]
      %v80 = vld [vmem:[#allocation5] sm:$0xff]
      %vm81 = vcmp.ge.f32.partialorder %v80, 0.0
      %vm82 = vcmp.ne.f32.partialorder %v80, 255.0
      %vm83 = vmand %vm81, %vm82
      %s84 = sadd.s32 %s76, 0
      %v85 = vstv %s84
      %v86 = vadd.s32 %v85, %v78
      %vm87 = vcmp.lt.s32.totalorder %v86, 4
      %v88 = vsel %vm87, 1, 0
      %vm89 = vcmp.eq.s32.totalorder %v88, 1
      %vm90 = vmand %vm83, %vm89
      %v91 = vmax.f32 %v79, 0.0
      %v92 = vmul.f32 %v79, %v80
      %v93 = vsub.f32 %v91, %v92
      %v94 = vand.u32 2147483647, %v79
      %v95 = vsub.f32 0.0, %v94
      %v96 = vmul.f32 %v95, 1.442695
      %v97 = vpow.pop %v96
      %v98 = vadd.f32 %v97, 1.0
      %v99 = vlog2.pop %v98
      %v100 = vmul.f32 %v99, 0.6931472
      %v101 = vmul.f32 -0.5, %v97
      %v102 = vadd.f32 %v101, 1.0
      %v103 = vmul.f32 %v102, %v97
      %v104 = vand.u32 2147483647, %v97
      %vm105 = vcmp.lt.f32.partialorder %v104, 0.0004427343
      %v106 = vsel %vm105, %v103, %v100
      %v107 = vadd.f32 %v93, %v106
      %v108 = vsel %vm90, %v107, 0.0
      %v109 = vsel %vm90, 1, 0
      %v110 = vcvt.s32.f32 %v109
      %v111 = vadd.f32 %v108, 0.0
      %v112 = vadd.f32 %v111, 0.0
      %v113 = vadd.f32 %v110, 0.0
      %v114 = vadd.f32 %v113, 0.0
      %v115 = vld [vmem:[#allocation7] sm:$0xff]
      %v116 = vadd.f32 %v115, %v112
      %117 = vst [vmem:[#allocation7] sm:$0xff] %v116
      %s118 = scalar_lea.vmem [#allocation7], 8
      %v119 = vld [vmem:[%s118] sm:$0xff]
      %v120 = vadd.f32 %v119, %v114
      %121 = vst [vmem:[%s118] sm:$0xff] %v120
    $region25: #{tpu_custom_call.1} parent=1 // pred_fallthru
      _
    // Predicated region
    $region26: #{tpu_custom_call.1} parent=1 // pred_check
      %p122 = pneg %p71
    $region27: #{tpu_custom_call.1} parent=1 // pred_check_branch
      %124 = sbr.rel (%p122) target = $region29
    $region28: #{tpu_custom_call.1} parent=1 // pred_region
      %v125 = vld [vmem:[#allocation2] sm:$0xff]
      %v126 = vld [vmem:[#allocation5] sm:$0xff]
      %vm127 = vcmp.ge.f32.partialorder %v126, 0.0
      %vm128 = vcmp.ne.f32.partialorder %v126, 255.0
      %vm129 = vmand %vm127, %vm128
      %v130 = vmax.f32 %v125, 0.0
      %v131 = vmul.f32 %v125, %v126
      %v132 = vsub.f32 %v130, %v131
      %v133 = vand.u32 2147483647, %v125
      %v134 = vsub.f32 0.0, %v133
      %v135 = vmul.f32 %v134, 1.442695
      %v136 = vpow.pop %v135
      %v137 = vadd.f32 %v136, 1.0
      %v138 = vlog2.pop %v137
      %v139 = vmul.f32 %v138, 0.6931472
      %v140 = vmul.f32 -0.5, %v136
      %v141 = vadd.f32 %v140, 1.0
      %v142 = vmul.f32 %v141, %v136
      %v143 = vand.u32 2147483647, %v136
      %vm144 = vcmp.lt.f32.partialorder %v143, 0.0004427343
      %v145 = vsel %vm144, %v142, %v139
      %v146 = vadd.f32 %v132, %v145
      %v147 = vsel %vm129, %v146, 0.0
      %v148 = vsel %vm129, 1, 0
      %v149 = vcvt.s32.f32 %v148
      %v150 = vadd.f32 %v147, 0.0
      %v151 = vadd.f32 %v150, 0.0
      %v152 = vadd.f32 %v149, 0.0
      %v153 = vadd.f32 %v152, 0.0
      %v154 = vld [vmem:[#allocation7] sm:$0xff]
      %v155 = vadd.f32 %v154, %v151
      %156 = vst [vmem:[#allocation7] sm:$0xff] %v155
      %s157 = scalar_lea.vmem [#allocation7], 8
      %v158 = vld [vmem:[%s157] sm:$0xff]
      %v159 = vadd.f32 %v158, %v153
      %160 = vst [vmem:[%s157] sm:$0xff] %v159
    $region29: #{tpu_custom_call.1} parent=1 // pred_fallthru
      _
    // Predicated region
    $region30: #{tpu_custom_call.1} parent=1 // pred_check
      _
    $region31: #{tpu_custom_call.1} parent=1 // pred_check_branch
      %162 = sbr.rel (0) target = $region33
    $region32: #{tpu_custom_call.1} parent=1 // pred_region
      %s164 = ssub.s32 256, 256
      %165 = vsyncadd [#allocation4], %s164
      %s166 = sshll.u32 [#allocation7], 4
      %s167 = int_to_ptr.vmem [resolvable:$true] %s166
      %172 = dma.vmem_to_hbm [thread:$0]  %s167, 256, %s2, [#allocation4], 128, 128, 8
    $region33: #{tpu_custom_call.1} parent=1 // pred_fallthru
      _
    // Predicated region
    $region34: #{tpu_custom_call.1} parent=1 // pred_check
      _
    $region35: #{tpu_custom_call.1} parent=1 // pred_check_branch
      %174 = sbr.rel (0) target = $region37
    $region36: #{tpu_custom_call.1} parent=1 // pred_region
      %175 = dma.done [#allocation4], 256
    $region37: #{tpu_custom_call.1} parent=1 // pred_fallthru
      _
    %176 = vsyncpa [#allocation3], 1
    %177 = vsyncpa [#allocation6], 1
    %178 = vsyncpa [#allocation4], 1

</llo_original>
